<compile_context>
chip_gen: v6e
topology: v6e:2x2x1
jax: 0.10.0
libtpu: 0.0.40
codegen_flags: <defaults>
</compile_context>

<pallas_src>
import functools

import jax
import jax.numpy as jnp
from jax.experimental import pallas as pl
from jax.experimental.pallas import tpu as pltpu

_MIB = 1024 * 1024


def _round_up(n, m):
    return -(-n // m) * m


def _device_kind():
    try:
        return jax.devices()[0].device_kind.lower()
    except Exception:
        return ""


def _vmem_budget(kind):
    """Returns (target bytes of x per block, scoped-VMEM limit to request or None)."""
    if "v5 lite" in kind or "v5e" in kind:
        return 4 * _MIB, 96 * _MIB      # 128 MiB physical VMEM, ~0.82 TB/s HBM
    if "v6" in kind:
        return 6 * _MIB, 96 * _MIB      # 128 MiB physical VMEM, ~1.4 TB/s HBM
    if "7" in kind:
        return 8 * _MIB, 48 * _MIB      # 64 MiB physical VMEM/TC, ~3.2 TB/s HBM
    return 2 * _MIB, None               # unknown chip: stay inside default scoped VMEM


def _pick_batch_tile(batch, row_vmem_bytes, sublane, target_bytes):
    """Largest sublane-aligned batch tile with ~target_bytes of (lane-padded) x
    per block, preferring >= 2 and even grid steps (pipelining + 2-TC sharding)."""
    tile = max(sublane, (target_bytes // max(row_vmem_bytes, 1)) // sublane * sublane)
    tile = min(tile, _round_up(batch, sublane))
    grid_b = pl.cdiv(batch, tile)
    if grid_b == 1 and batch > sublane:
        # Split into (at least) two steps so the pipeline and both TCs have work.
        tile = _round_up(pl.cdiv(batch, 2), sublane)
    elif grid_b > 1 and grid_b % 2 == 1:
        # Bump to an even number of grid steps for balanced megacore sharding.
        bumped = _round_up(pl.cdiv(batch, grid_b + 1), sublane)
        if bumped >= sublane and pl.cdiv(batch, bumped) % 2 == 0:
            tile = bumped
    return max(tile, sublane)


def _fm_mxu_kernel(x_ref, sel_ref, o_ref, *, reduce_sum):
    # x_ref:   (TB, F*D) lane-dense tile (input dtype; MXU accumulates in f32)
    # sel_ref: (F*D, D)  stack of DxD identities, VMEM-resident across steps
    x = x_ref[...]
    sel = sel_ref[...]
    s = jnp.dot(x, sel, preferred_element_type=jnp.float32)              # (TB, D)
    if reduce_sum:
        # Only the *total* sum-of-squares is needed: one f32 lane reduce
        # instead of a second selection matmul (halves MXU pushes).
        ssq = jnp.sum(x * x, axis=1, keepdims=True, dtype=jnp.float32)   # (TB, 1)
        sos = jnp.sum(s * s, axis=1, keepdims=True)                      # (TB, 1)
        o_ref[...] = (0.5 * (sos - ssq)).astype(o_ref.dtype)
    else:
        sq = jnp.dot(x * x, sel, preferred_element_type=jnp.float32)     # (TB, D)
        o_ref[...] = (0.5 * (s * s - sq)).astype(o_ref.dtype)


def _fm_sublane_kernel(x_ref, o_ref, *, reduce_sum):
    # x_ref: (TB, F, D) block; field reduction runs on the sublane axis (XLU),
    # accumulating in f32. Used when D is lane-dense or f32-and-wide.
    x = x_ref[...]
    s = jnp.sum(x, axis=1, dtype=jnp.float32)            # (TB, D)
    ssq = jnp.sum(x * x, axis=1, dtype=jnp.float32)      # (TB, D)
    ix = s * s - ssq
    if reduce_sum:
        o_ref[...] = (0.5 * jnp.sum(ix, axis=1, keepdims=True)).astype(o_ref.dtype)
    else:
        o_ref[...] = (0.5 * ix).astype(o_ref.dtype)


def factorization_machine(x, reduce_sum=True, batch_tile=None):
    """Pallas TPU implementation of the FactorizationMachine forward pass.

    x: (B, F, D) array. Returns (B, 1) if reduce_sum else (B, D).
    """
    B, F, D = x.shape
    FD = F * D
    itemsize = jnp.dtype(x.dtype).itemsize
    sublane = max(8, 32 // itemsize)        # dtype-aware: 8 f32 / 16 bf16 / 32 int8
    out_cols = 1 if reduce_sum else D

    target_bytes, vmem_limit = _vmem_budget(_device_kind())
    effective_cap = vmem_limit if vmem_limit is not None else 14 * _MIB

    # Strategy: sublane (3-D block + XLU reduce) when D is lane-dense or wide
    # f32 (f32 MXU rate is low and the selection matmul does D-redundant MACs);
    # otherwise the MXU selection-matmul path on a lane-dense (B, F*D) slab.
    use_sublane = (D % 128 == 0) or (itemsize == 4 and D >= 64)

    lanes_fd = _round_up(FD, 128)
    lanes_d = _round_up(D, 128)
    if use_sublane:
        row_vmem = _round_up(F, sublane) * lanes_d * itemsize
    else:
        row_vmem = lanes_fd * itemsize

    if batch_tile is None:
        tile = _pick_batch_tile(B, row_vmem, sublane, target_bytes)
    else:
        tile = _round_up(max(int(batch_tile), sublane), sublane)

    def vmem_estimate(t):
        x_blk = t * row_vmem
        out_blk = t * _round_up(out_cols, 128) * itemsize
        f32_tmp = t * lanes_d * 4
        sel_blk = 0 if use_sublane else _round_up(FD, sublane) * lanes_d * itemsize
        # 2x double-buffered x / out / sel, one x*x temp, a few f32 temps, slack.
        return 2 * x_blk + 2 * out_blk + 2 * sel_blk + x_blk + 3 * f32_tmp + 2 * _MIB

    if batch_tile is None:
        while tile > sublane and vmem_estimate(tile) > effective_cap:
            tile = max(sublane, _round_up(tile // 2, sublane))

    grid_b = pl.cdiv(B, tile)
    out_shape = jax.ShapeDtypeStruct((B, out_cols), x.dtype)

    if use_sublane:
        flops = B * (3 * F * D + 4 * D)
        bytes_acc = B * FD * itemsize + B * out_cols * itemsize
    else:
        mm = 2 * FD * D
        flops = B * ((mm + 2 * FD + 3 * D) if reduce_sum else (2 * mm + FD + 3 * D))
        bytes_acc = B * FD * itemsize + FD * D * itemsize + B * out_cols * itemsize
    cost = pl.CostEstimate(flops=int(flops), transcendentals=0,
                           bytes_accessed=int(bytes_acc))

    compiler_params = pltpu.CompilerParams(
        dimension_semantics=("parallel",),
        vmem_limit_bytes=vmem_limit,
    )

    if use_sublane:
        kernel = functools.partial(_fm_sublane_kernel, reduce_sum=reduce_sum)
        out = pl.pallas_call(
            kernel,
            out_shape=out_shape,
            grid_spec=pltpu.PrefetchScalarGridSpec(
                num_scalar_prefetch=0,
                grid=(grid_b,),
                in_specs=[pl.BlockSpec((tile, F, D), lambda i: (i, 0, 0))],
                out_specs=pl.BlockSpec((tile, out_cols), lambda i: (i, 0)),
            ),
            compiler_params=compiler_params,
            cost_estimate=cost,
        )(x)
    else:
        # Free contiguous view; no copy.
        x2d = x.reshape(B, FD)
        # (F*D, D) stack of DxD identities: x2d @ sel == per-dim sum over fields.
        sel = jnp.tile(jnp.eye(D, dtype=x.dtype), (F, 1))
        kernel = functools.partial(_fm_mxu_kernel, reduce_sum=reduce_sum)
        out = pl.pallas_call(
            kernel,
            out_shape=out_shape,
            grid_spec=pltpu.PrefetchScalarGridSpec(
                num_scalar_prefetch=0,
                grid=(grid_b,),
                in_specs=[
                    pl.BlockSpec((tile, FD), lambda i: (i, 0)),
                    # Constant block index -> fetched once, stays VMEM-resident.
                    pl.BlockSpec((FD, D), lambda i: (0, 0)),
                ],
                out_specs=pl.BlockSpec((tile, out_cols), lambda i: (i, 0)),
            ),
            compiler_params=compiler_params,
            cost_estimate=cost,
        )(x2d, sel)

    return out


def _fm_reference(x, reduce_sum=True):
    square_of_sum = jnp.sum(x, axis=1) ** 2
    sum_of_square = jnp.sum(x ** 2, axis=1)
    ix = square_of_sum - sum_of_square
    if reduce_sum:
        ix = jnp.sum(ix, axis=1, keepdims=True)
    return 0.5 * ix


if __name__ == "__main__":
    keys = jax.random.split(jax.random.PRNGKey(0), 5)

    def run_case(name, x, reduce_sum, rtol=1e-3, atol=1e-3):
        out = jax.block_until_ready(factorization_machine(x, reduce_sum=reduce_sum))
        ref = _fm_reference(x.astype(jnp.float32), reduce_sum=reduce_sum)
        assert out.shape == ref.shape, (name, out.shape, ref.shape)
        err = jnp.max(jnp.abs(out.astype(jnp.float32) - ref))
        assert bool(jnp.allclose(out.astype(jnp.float32), ref, rtol=rtol, atol=atol)), (
            f"{name}: max abs err = {err}")

    # Integer-valued embeddings keep every intermediate exactly representable,
    # so checks are independent of MXU accumulation/rounding details.

    # MXU path, reduce_sum=True, ragged last block (B not a tile multiple).
    x1 = jnp.round(jax.random.normal(keys[0], (19, 8, 32)) * 3.0).astype(jnp.float32)
    run_case("mxu/reduce/ragged", x1, True)

    # MXU path, reduce_sum=False, evenly split 2-step grid.
    x2 = jnp.round(jax.random.normal(keys[1], (16, 8, 32)) * 3.0).astype(jnp.float32)
    run_case("mxu/no_reduce", x2, False)

    # Sublane-reduce path (D=128 lane-dense), reduce_sum=True, ragged.
    x3 = jnp.round(jax.random.normal(keys[2], (24, 4, 128)) * 3.0).astype(jnp.float32)
    run_case("sublane/reduce/ragged", x3, True)

    # Sublane-reduce path, reduce_sum=False, ragged (1 valid row in last block).
    x4 = jnp.round(jax.random.normal(keys[3], (17, 4, 128)) * 3.0).astype(jnp.float32)
    run_case("sublane/no_reduce/ragged", x4, False)

    # bf16 MXU path (exercises 16-row sublane rounding); looser tolerance for
    # the final bf16 output rounding.
    x5 = jnp.round(jax.random.normal(keys[4], (40, 8, 32)) * 2.0).astype(jnp.bfloat16)
    run_case("mxu/reduce/bf16", x5, True, rtol=2e-2, atol=2e-2)

    print("KERNEL_OK")
</pallas_src>

<mosaic_0001>
module attributes {stable_mosaic.version = 11 : i64} {
  func.func @_fm_mxu_kernel(%arg0: i32, %arg1: memref<16x256xf32, #tpu.memory_space<vmem>>, %arg2: memref<256x32xf32, #tpu.memory_space<vmem>>, %arg3: memref<16x1xf32, #tpu.memory_space<vmem>>) attributes {dimension_semantics = [#tpu.dimension_semantics<parallel>], iteration_bounds = array<i64: 2>, scalar_prefetch = 0 : i64, scratch_operands = 0 : i64, tpu.core_type = #tpu.core_type<tc>, window_params = [{transform_indices = @transform_0, window_bounds = array<i64: 16, 256>}, {pipeline_mode = #tpu.pipeline_mode<synchronous>, transform_indices = @transform_1, window_bounds = array<i64: 256, 32>}, {transform_indices = @transform_2, window_bounds = array<i64: 16, 1>}]} {
    %c0 = arith.constant 0 : index
    %c0_0 = arith.constant 0 : index
    %0 = vector.load %arg1[%c0, %c0_0] : memref<16x256xf32, #tpu.memory_space<vmem>>, vector<16x256xf32>
    %c0_1 = arith.constant 0 : index
    %c0_2 = arith.constant 0 : index
    %1 = vector.load %arg2[%c0_1, %c0_2] : memref<256x32xf32, #tpu.memory_space<vmem>>, vector<256x32xf32>
    %cst = arith.constant dense<0.000000e+00> : vector<16x32xf32>
    %2 = tpu.matmul %0, %1, %cst {dimension_numbers = #tpu.dot_dimension_numbers<[1], [0], [0], [1], [0, 0, 1, 1], [], []>} : vector<16x256xf32>, vector<256x32xf32>, vector<16x32xf32> -> vector<16x32xf32>
    %3 = arith.mulf %0, %0 : vector<16x256xf32>
    %cst_3 = arith.constant dense<0.000000e+00> : vector<16xf32>
    %4 = vector.multi_reduction <add>, %3, %cst_3 [1] : vector<16x256xf32> to vector<16xf32>
    %5 = vector.shape_cast %4 : vector<16xf32> to vector<16x1xf32>
    %6 = arith.mulf %2, %2 : vector<16x32xf32>
    %cst_4 = arith.constant dense<0.000000e+00> : vector<16xf32>
    %7 = vector.multi_reduction <add>, %6, %cst_4 [1] : vector<16x32xf32> to vector<16xf32>
    %8 = vector.shape_cast %7 : vector<16xf32> to vector<16x1xf32>
    %9 = arith.subf %8, %5 : vector<16x1xf32>
    %cst_5 = arith.constant 5.000000e-01 : f32
    %10 = vector.broadcast %cst_5 : f32 to vector<16x1xf32>
    %11 = arith.mulf %10, %9 : vector<16x1xf32>
    %c0_6 = arith.constant 0 : index
    %c0_7 = arith.constant 0 : index
    %12 = vector.load %arg3[%c0_6, %c0_7] : memref<16x1xf32, #tpu.memory_space<vmem>>, vector<16x1xf32>
    tpu.vector_store %arg3[%c0_6, %c0_7], %11 {strides = array<i32>} : memref<16x1xf32, #tpu.memory_space<vmem>>, vector<16x1xf32>,
    return
  }
  func.func @transform_0(%arg0: i32) -> (i32, i32) {
    %c0_i32 = arith.constant 0 : i32
    %c0_i32_0 = arith.constant 0 : i32
    return %arg0, %c0_i32 : i32, i32
  }
  func.func @transform_1(%arg0: i32) -> (i32, i32) {
    %c0_i32 = arith.constant 0 : i32
    %c0_i32_0 = arith.constant 0 : i32
    %c0_i32_1 = arith.constant 0 : i32
    return %c0_i32, %c0_i32_0 : i32, i32
  }
  func.func @transform_2(%arg0: i32) -> (i32, i32) {
    %c0_i32 = arith.constant 0 : i32
    %c0_i32_0 = arith.constant 0 : i32
    return %arg0, %c0_i32 : i32, i32
  }
}

</mosaic_0001>

<llo_original>
// kernel: tpu_custom_call.1
$region0: #{tpu_custom_call.1}
  #allocation0 [shape = 'u32[]', space=smem, size = 0x4, offset = 0x4, fixed_abs, tag = 'smem constant byte address 0x4 - core index']
  #allocation1 [shape = 'u32[144,128]{1,0:T(1,128)}', space=vmem, size = 0x12000, scoped, tag = 'internal scratch']
  %s0 = inlined_call_operand.vmem [shape: f32[19,256], index: 0, kind: input, shape index: {}]
  %s1 = inlined_call_operand.vmem [shape: f32[256,32], index: 1, kind: input, shape index: {}]
  %s2 = inlined_call_operand.vmem [shape: f32[19,1], index: 2, kind: output, shape index: {}]
  %s3 = sld [smem:[#allocation0]]
  $region89: #{tpu_custom_call.1} parent=0
    _
  %s5 = ssub.s32 1, %s3
  %s6 = scalar_select 0, %s5, %s3
  $region1: #{tpu_custom_call.1} parent=0
    #allocation2 [shape = 'u8[16384]{0}', space=vmem, size = 0x4000, scoped, tag = 'output window, operand 0']
    loop: start=0, step=1, limit=4
    $region2: #{tpu_custom_call.1} parent=1 // loop_pre_header
      _
    $region3: #{tpu_custom_call.1} parent=1 // loop_header
      %s8 = sphi 0, %s12
      %p9 = scmp.ge.s32.totalorder %s8, 4
      %s18 = sphi 0, %s20
      %s21 = sphi 0, %s18
      %s22 = sphi 0, %s21
      %s38 = sphi 0, %s22
      %s42 = sphi 0, %s42
      %s44 = sphi 0, %s42
      %s45 = sphi 0, %s44
      %s59 = sphi 0, %s45
      %s65 = sphi 0, %s67
      %s68 = sphi 0, %s65
      %s69 = sphi 0, %s68
      %s85 = sphi 0, %s69
    $region4: #{tpu_custom_call.1} parent=1 // loop_header_branch
      %11 = sbr.rel (%p9) target = $region8
    $region5: #{tpu_custom_call.1} parent=1 // loop_body
      %s13 = ssub.s32 %s8, 1
      %s14 = ssub.s32 %s8, 2
      %s15 = sadd.s32 %s8, 1
      %s16 = ssub.s32 %s8, %s15
      %p17 = scmp.eq.s32.totalorder %s16, 0
      %s19 = sadd.s32 %s18, 1
      %s20 = scalar_select %p17, %s18, %s19
      %p23 = pneg %p17
      %p24 = scmp.eq.s32.totalorder %s8, 1
      %p25 = por %p23, %p24
      %p26 = scmp.ne.s32.totalorder %s18, %s21
      %p27 = scmp.eq.s32.totalorder %s8, 0
      %p28 = por %p26, %p27
      %p29 = scmp.ne.s32.totalorder %s18, %s21
      %p30 = scmp.eq.s32.totalorder %s13, 1
      %p31 = por %p29, %p30
      %p32 = scmp.ne.s32.totalorder %s21, %s22
      %p33 = scmp.eq.s32.totalorder %s13, 0
      %p34 = por %p32, %p33
      %p35 = scmp.ne.s32.totalorder %s21, %s22
      %p36 = scmp.eq.s32.totalorder %s14, 1
      %p37 = por %p35, %p36
      %p39 = scmp.ne.s32.totalorder %s22, %s38
      %p40 = scmp.eq.s32.totalorder %s14, 0
      %p41 = por %p39, %p40
      %s43 = sadd.s32 %s42, 1
      %p46 = scmp.eq.s32.totalorder %s8, 1
      %p47 = scmp.ne.s32.totalorder %s42, %s44
      %p48 = scmp.eq.s32.totalorder %s8, 0
      %p49 = por %p47, %p48
      %p50 = scmp.ne.s32.totalorder %s42, %s44
      %p51 = scmp.eq.s32.totalorder %s13, 1
      %p52 = por %p50, %p51
      %p53 = scmp.ne.s32.totalorder %s44, %s45
      %p54 = scmp.eq.s32.totalorder %s13, 0
      %p55 = por %p53, %p54
      %p56 = scmp.ne.s32.totalorder %s44, %s45
      %p57 = scmp.eq.s32.totalorder %s14, 1
      %p58 = por %p56, %p57
      %p60 = scmp.ne.s32.totalorder %s45, %s59
      %p61 = scmp.eq.s32.totalorder %s14, 0
      %p62 = por %p60, %p61
      %s63 = ssub.s32 %s8, %s15
      %p64 = scmp.eq.s32.totalorder %s63, 0
      %s66 = sadd.s32 %s65, 1
      %s67 = scalar_select %p64, %s65, %s66
      %p70 = pneg %p64
      %p71 = scmp.eq.s32.totalorder %s8, 1
      %p72 = por %p70, %p71
      %p73 = scmp.ne.s32.totalorder %s65, %s68
      %p74 = scmp.eq.s32.totalorder %s8, 0
      %p75 = por %p73, %p74
      %p76 = scmp.ne.s32.totalorder %s65, %s68
      %p77 = scmp.eq.s32.totalorder %s13, 1
      %p78 = por %p76, %p77
      %p79 = scmp.ne.s32.totalorder %s68, %s69
      %p80 = scmp.eq.s32.totalorder %s13, 0
      %p81 = por %p79, %p80
      %p82 = scmp.ne.s32.totalorder %s68, %s69
      %p83 = scmp.eq.s32.totalorder %s14, 1
      %p84 = por %p82, %p83
      %p86 = scmp.ne.s32.totalorder %s69, %s85
      %p87 = scmp.eq.s32.totalorder %s14, 0
      %p88 = por %p86, %p87
      %p89 = scmp.le.s32.totalorder 1, %s8
      %p90 = scmp.lt.s32.totalorder %s8, 3
      %p91 = pnand %p89, %p90
      %p92 = pneg %p91
      // Predicated region
      $region9: #{tpu_custom_call.1} parent=5 // pred_check
        _
      $region10: #{tpu_custom_call.1} parent=5 // pred_check_branch
        %94 = sbr.rel (%p91) target = $region12
      $region11: #{tpu_custom_call.1} parent=5 // pred_region
        %s95 = ssub.s32 %s8, 1
        // Predicated region
        $region13: #{tpu_custom_call.1} parent=11 // pred_check
          %p96 = pneg %p55
        $region14: #{tpu_custom_call.1} parent=11 // pred_check_branch
          %98 = sbr.rel (%p96) target = $region16
        $region15: #{tpu_custom_call.1} parent=11 // pred_region
          _
        $region16: #{tpu_custom_call.1} parent=11 // pred_fallthru
          _
      $region12: #{tpu_custom_call.1} parent=5 // pred_fallthru
        _
      %p99 = scmp.lt.s32.totalorder %s8, 2
      // Predicated region
      $region17: #{tpu_custom_call.1} parent=5 // pred_check
        %p100 = pneg %p99
      $region18: #{tpu_custom_call.1} parent=5 // pred_check_branch
        %102 = sbr.rel (%p100) target = $region20
      $region19: #{tpu_custom_call.1} parent=5 // pred_region
        // Predicated region
        $region21: #{tpu_custom_call.1} parent=19 // pred_check
          %p103 = pneg %p28
        $region22: #{tpu_custom_call.1} parent=19 // pred_check_branch
          %105 = sbr.rel (%p103) target = $region24
        $region23: #{tpu_custom_call.1} parent=19 // pred_region
          %s106 = smul.u32 2, %s8
          %s107 = ssub.s32 3, %s106
          %p108 = scmp.lt.s32.totalorder %s107, 2
          %s109 = scalar_select %p108, %s107, 2
          %s110 = smul.u32 128, %s109
          %s111 = smul.u32 %s110, 2
          %p112 = scmp.lt.s32.totalorder %s106, 2
          %s113 = scalar_select %p112, %s106, 2
          %s114 = smul.addr %s113, 2
          %s115 = smul.addr %s114, 8
          %s116 = scalar_lea.vmem %s0, %s115
          %s117 = smul.u32 2, %s8
          %s118 = ssub.s32 3, %s117
          %p119 = scmp.lt.s32.totalorder %s118, 2
          %s120 = scalar_select %p119, %s118, 2
          %s121 = smul.u32 128, %s120
          %s122 = smul.u32 %s121, 2
        $region24: #{tpu_custom_call.1} parent=19 // pred_fallthru
          _
      $region20: #{tpu_custom_call.1} parent=5 // pred_fallthru
        _
      %p123 = scmp.le.s32.totalorder 1, %s8
      %p124 = scmp.lt.s32.totalorder %s8, 3
      %p125 = pnand %p123, %p124
      %p126 = pneg %p125
      // Predicated region
      $region25: #{tpu_custom_call.1} parent=5 // pred_check
        _
      $region26: #{tpu_custom_call.1} parent=5 // pred_check_branch
        %128 = sbr.rel (%p125) target = $region28
      $region27: #{tpu_custom_call.1} parent=5 // pred_region
        %s129 = ssub.s32 %s8, 1
        %s130 = smul.u32 2, %s13
        %s131 = ssub.s32 3, %s130
        %p132 = scmp.lt.s32.totalorder %s131, 2
        %s133 = scalar_select %p132, %s131, 2
        %s134 = smul.u32 128, %s133
        %s135 = smul.u32 %s134, 2
        %p136 = scmp.lt.s32.totalorder %s130, 2
        %s137 = scalar_select %p136, %s130, 2
        %s138 = smul.addr %s137, 2
        %s139 = smul.addr %s138, 8
        %s140 = scalar_lea.vmem %s0, %s139
        %p141 = pneg %p34
        %p142 = pneg %p31
        %p143 = pneg %p55
        %p144 = pneg %p52
        %p145 = pneg %p81
        %p146 = pneg %p78
        %s147 = sand.u32 %s68, 1
        %s148 = sand.u32 %s68, 1
        %s149 = smul.addr %s148, 16
        %s150 = scalar_lea.vmem [#allocation2], %s149
        %s151 = smul.u32 2, %s13
        %s152 = ssub.s32 3, %s151
        %p153 = scmp.lt.s32.totalorder %s152, 2
        %s154 = scalar_select %p153, %s152, 2
        %s155 = smul.u32 128, %s154
        %s156 = smul.u32 %s155, 2
        %p157 = scmp.lt.s32.totalorder %s151, 2
        %s158 = scalar_select %p157, %s151, 2
        %s159 = smul.addr %s158, 2
        %s160 = smul.addr %s159, 8
        %s161 = scalar_lea.vmem %s0, %s160
        %s162 = smul.u32 2, %s13
        %s163 = ssub.s32 3, %s162
        %p164 = scmp.lt.s32.totalorder %s163, 2
        %s165 = scalar_select %p164, %s163, 2
        %s166 = smul.u32 128, %s165
        %s167 = smul.u32 %s166, 2
        %s168 = smul.u32 2, %s13
        %s169 = ssub.s32 3, %s168
        %p170 = scmp.lt.s32.totalorder %s169, 2
        %s171 = scalar_select %p170, %s169, 2
        %s172 = smul.u32 128, %s171
        %v173 = vld [vmem:[%s161] sm:$0xff]
        %v174 = vld [vmem:[%s161 + $0x8] sm:$0xff]
        %v175 = vld [vmem:[%s161 + $0x10] sm:$0xff]
        %v176 = vld [vmem:[%s161 + $0x18] sm:$0xff]
        %v177 = vld [vmem:[%s1] sm:$0xff]
        %v178 = vld [vmem:[%s1 + $0x8] sm:$0xff]
        %v179 = vld [vmem:[%s1 + $0x10] sm:$0xff]
        %v180 = vld [vmem:[%s1 + $0x18] sm:$0xff]
        %v181 = vld [vmem:[%s1 + $0x20] sm:$0xff]
        %v182 = vld [vmem:[%s1 + $0x28] sm:$0xff]
        %v183 = vld [vmem:[%s1 + $0x30] sm:$0xff]
        %v184 = vld [vmem:[%s1 + $0x38] sm:$0xff]
        %v185 = vld [vmem:[%s1 + $0x40] sm:$0xff]
        %v186 = vld [vmem:[%s1 + $0x48] sm:$0xff]
        %v187 = vld [vmem:[%s1 + $0x50] sm:$0xff]
        %v188 = vld [vmem:[%s1 + $0x58] sm:$0xff]
        %v189 = vld [vmem:[%s1 + $0x60] sm:$0xff]
        %v190 = vld [vmem:[%s1 + $0x68] sm:$0xff]
        %v191 = vld [vmem:[%s1 + $0x70] sm:$0xff]
        %v192 = vld [vmem:[%s1 + $0x78] sm:$0xff]
        %v193 = vld [vmem:[%s1 + $0x80] sm:$0xff]
        %v194 = vld [vmem:[%s1 + $0x88] sm:$0xff]
        %v195 = vld [vmem:[%s1 + $0x90] sm:$0xff]
        %v196 = vld [vmem:[%s1 + $0x98] sm:$0xff]
        %v197 = vld [vmem:[%s1 + $0xa0] sm:$0xff]
        %v198 = vld [vmem:[%s1 + $0xa8] sm:$0xff]
        %v199 = vld [vmem:[%s1 + $0xb0] sm:$0xff]
        %v200 = vld [vmem:[%s1 + $0xb8] sm:$0xff]
        %v201 = vld [vmem:[%s1 + $0xc0] sm:$0xff]
        %v202 = vld [vmem:[%s1 + $0xc8] sm:$0xff]
        %v203 = vld [vmem:[%s1 + $0xd0] sm:$0xff]
        %v204 = vld [vmem:[%s1 + $0xd8] sm:$0xff]
        %v205 = vld [vmem:[%s1 + $0xe0] sm:$0xff]
        %v206 = vld [vmem:[%s1 + $0xe8] sm:$0xff]
        %v207 = vld [vmem:[%s1 + $0xf0] sm:$0xff]
        %v208 = vld [vmem:[%s1 + $0xf8] sm:$0xff]
        %209 = vmatprep.subr.mxu0 0.0
        %210 = vmatpush1.msra.mxu0 %v192
        %211 = vmatprep.subr.mxu0 0.0
        %212 = vmatpush1.msra.mxu0 %v191
        %213 = vmatprep.subr.mxu0 0.0
        %214 = vmatpush1.msra.mxu0 %v190
        %215 = vmatprep.subr.mxu0 0.0
        %216 = vmatpush1.msra.mxu0 %v189
        %217 = vmatprep.subr.mxu0 0.0
        %218 = vmatpush1.msra.mxu0 %v188
        %219 = vmatprep.subr.mxu0 0.0
        %220 = vmatpush1.msra.mxu0 %v187
        %221 = vmatprep.subr.mxu0 0.0
        %222 = vmatpush1.msra.mxu0 %v186
        %223 = vmatprep.subr.mxu0 0.0
        %224 = vmatpush1.msra.mxu0 %v185
        %225 = vmatprep.subr.mxu0 0.0
        %226 = vmatpush1.msra.mxu0 %v184
        %227 = vmatprep.subr.mxu0 0.0
        %228 = vmatpush1.msra.mxu0 %v183
        %229 = vmatprep.subr.mxu0 0.0
        %230 = vmatpush1.msra.mxu0 %v182
        %231 = vmatprep.subr.mxu0 0.0
        %232 = vmatpush1.msra.mxu0 %v181
        %233 = vmatprep.subr.mxu0 0.0
        %234 = vmatpush1.msra.mxu0 %v180
        %235 = vmatprep.subr.mxu0 0.0
        %236 = vmatpush1.msra.mxu0 %v179
        %237 = vmatprep.subr.mxu0 0.0
        %238 = vmatpush1.msra.mxu0 %v178
        %239 = vmatprep.subr.mxu0 0.0
        %240 = vmatpush1.msra.mxu0 %v177
        %241 = vmatprep.subr.mxu0 0.0
        %242 = vmatpush2.msra.mxu0 %v208
        %243 = vmatprep.subr.mxu0 0.0
        %244 = vmatpush2.msra.mxu0 %v207
        %245 = vmatprep.subr.mxu0 0.0
        %246 = vmatpush2.msra.mxu0 %v206
        %247 = vmatprep.subr.mxu0 0.0
        %248 = vmatpush2.msra.mxu0 %v205
        %249 = vmatprep.subr.mxu0 0.0
        %250 = vmatpush2.msra.mxu0 %v204
        %251 = vmatprep.subr.mxu0 0.0
        %252 = vmatpush2.msra.mxu0 %v203
        %253 = vmatprep.subr.mxu0 0.0
        %254 = vmatpush2.msra.mxu0 %v202
        %255 = vmatprep.subr.mxu0 0.0
        %256 = vmatpush2.msra.mxu0 %v201
        %257 = vmatprep.subr.mxu0 0.0
        %258 = vmatpush2.msra.mxu0 %v200
        %259 = vmatprep.subr.mxu0 0.0
        %260 = vmatpush2.msra.mxu0 %v199
        %261 = vmatprep.subr.mxu0 0.0
        %262 = vmatpush2.msra.mxu0 %v198
        %263 = vmatprep.subr.mxu0 0.0
        %264 = vmatpush2.msra.mxu0 %v197
        %265 = vmatprep.subr.mxu0 0.0
        %266 = vmatpush2.msra.mxu0 %v196
        %267 = vmatprep.subr.mxu0 0.0
        %268 = vmatpush2.msra.mxu0 %v195
        %269 = vmatprep.subr.mxu0 0.0
        %270 = vmatpush2.msra.mxu0 %v194
        %271 = vmatprep.subr.mxu0 0.0
        %272 = vmatpush2.msra.mxu0 %v193
        %273 = vmatprep.mubr.f32.mxu0 %v174
        %274 = vmatmul.mubr.f32.gmra.mxu0 %v173
        %v275 = vpop.f32.mrf.mxu0
        %v276 = vadd.f32 0.0, %v275
        %v277 = vpop.f32.mrf.mxu0
        %278 = vmatprep.mubr.f32.mxu0 %v176
        %279 = vmatmul.mubr.f32.gmra.mxu0 %v175
        %v280 = vpop.f32.mrf.mxu0
        %v281 = vadd.f32 0.0, %v280
        %v282 = vpop.f32.mrf.mxu0
        %283 = vdwg.mxu0
        %v284 = vmul.f32 %v173, %v173
        %v285 = vmul.f32 %v174, %v174
        %v286 = vmul.f32 %v175, %v175
        %v287 = vmul.f32 %v176, %v176
        %v288 = vadd.f32 %v284, %v285
        %289 = vadd.xlane.f32.xlu0 %v288
        %v290 = vpop.xlane.xlu0 %289
        %v291 = vadd.f32 %v286, %v287
        %292 = vadd.xlane.f32.xlu0 %v291
        %v293 = vpop.xlane.xlu0 %292
        %v294 = vmul.f32 %v276, %v276
        %v295 = vmul.f32 %v281, %v281
        %vm296 = vcmask 261120
        %v297 = vsel %vm296, %v294, 0.0
        %298 = vadd.xlane.f32.xlu0 %v297
        %v299 = vpop.xlane.xlu0 %298
        %v300 = vsel %vm296, %v295, 0.0
        %301 = vadd.xlane.f32.xlu0 %v300
        %v302 = vpop.xlane.xlu0 %301
        %v303 = vsub.f32 %v299, %v290
        %v304 = vsub.f32 %v302, %v293
        %v305 = vmul.f32 %v303, 0.5
        %v306 = vmul.f32 %v304, 0.5
        %vm307 = vcmask 7168
        %308 = vst.msk [vmem:[%s150] sm:$0xff] %vm307, %v305
        %309 = vst.msk [vmem:[%s150 + $0x8] sm:$0xff] %vm307, %v306
        %s310 = sand.u32 %s68, 1
        %s311 = sand.u32 %s68, 1
        %s312 = smul.addr %s311, 16
        %s313 = scalar_lea.vmem [#allocation2], %s312
        // Predicated region
        $region29: #{tpu_custom_call.1} parent=27 // pred_check
          %p314 = pneg %p78
        $region30: #{tpu_custom_call.1} parent=27 // pred_check_branch
          %316 = sbr.rel (%p314) target = $region32
        $region31: #{tpu_custom_call.1} parent=27 // pred_region
          %s317 = smul.u32 2, %s13
          %s318 = ssub.s32 3, %s317
          %p319 = scmp.lt.s32.totalorder %s318, 2
          %s320 = scalar_select %p319, %s318, 2
          %s321 = smul.u32 128, %s320
          %p322 = scmp.ne.s32.totalorder 0, %s321
          %s323 = smul.addr %s317, 8
          %s324 = scalar_lea.vmem %s2, %s323
          // Predicated region
          $region33: #{tpu_custom_call.1} parent=31 // pred_check
            %p325 = pneg %p322
          $region34: #{tpu_custom_call.1} parent=31 // pred_check_branch
            %327 = sbr.rel (%p325) target = $region36
          $region35: #{tpu_custom_call.1} parent=31 // pred_region
            // Predicated region
            $region37: #{tpu_custom_call.1} parent=35 // pred_check
              _
            $region38: #{tpu_custom_call.1} parent=35 // pred_check_branch
              %329 = sbr.rel (0) target = $region40
            $region39: #{tpu_custom_call.1} parent=35 // pred_region
              // Predicated region
              $region59: #{tpu_custom_call.1} parent=39 // pred_check
                _
              $region60: #{tpu_custom_call.1} parent=39 // pred_check_branch
                %381 = sbr.rel (0) target = $region62
              $region61: #{tpu_custom_call.1} parent=39 // pred_region
                %s382 = sshrl.u32 %s320, 1
                // While loop
                $region63: #{tpu_custom_call.1} parent=61 // loop_pre_header
                  _
                $region64: #{tpu_custom_call.1} parent=61 // loop_header
                  %s384 = sphi 0, %s386
                  %p385 = scmp.ge.s32.totalorder %s384, %s382
                  %s389 = sphi 0, %s398
                  %s390 = sphi %s313, %s401
                  %s391 = sphi %s324, %s402
                $region65: #{tpu_custom_call.1} parent=61 // loop_header_branch
                  %388 = sbr.rel (%p385) target = $region69
                $region66: #{tpu_custom_call.1} parent=61 // loop_body
                  %v392 = vld [vmem:[%s390] sm:$0xff]
                  %393 = vst [vmem:[%s391] sm:$0xff] %v392
                  %v394 = vld [vmem:[%s390 + $0x8] sm:$0xff]
                  %395 = vst [vmem:[%s391 + $0x8] sm:$0xff] %v394
                  %s396 = sadd.s32 1, %s389
                  %p397 = scmp.ge.s32.totalorder %s396, %s382
                  %s398 = scalar_select %p397, 0, %s396
                  %s399 = smul.u32 %s398, 16
                  %s400 = smul.u32 %s398, 16
                  %s401 = scalar_lea.vmem %s313, %s399 [#allocation2]
                  %s402 = scalar_lea.vmem %s324, %s400
                $region67: #{tpu_custom_call.1} parent=61 // loop_footer
                  %s386 = sadd.s32 %s384, 1
                $region68: #{tpu_custom_call.1} parent=61 // loop_footer_branch
                  %383 = sbr.rel target = $region64
                $region69: #{tpu_custom_call.1} parent=61 // loop_exit
                  _
                %s403 = sshrl.u32 %s320, 1
                %s404 = sand.u32 %s320, 1
                %s405 = smul.u32 %s403, 2
                %s406 = smul.u32 8, %s405
                %s407 = scalar_lea.vmem %s313, %s406 [#allocation2]
                %s408 = smul.u32 8, %s405
                %s409 = scalar_lea.vmem %s324, %s408
                // While loop
                $region70: #{tpu_custom_call.1} parent=61 // loop_pre_header
                  _
                $region71: #{tpu_custom_call.1} parent=61 // loop_header
                  %s411 = sphi 0, %s413
                  %p412 = scmp.ge.s32.totalorder %s411, %s404
                  %s416 = sphi 0, %s423
                  %s417 = sphi %s407, %s426
                  %s418 = sphi %s409, %s427
                $region72: #{tpu_custom_call.1} parent=61 // loop_header_branch
                  %415 = sbr.rel (%p412) target = $region76
                $region73: #{tpu_custom_call.1} parent=61 // loop_body
                  %v419 = vld [vmem:[%s417] sm:$0xff]
                  %420 = vst [vmem:[%s418] sm:$0xff] %v419
                  %s421 = sadd.s32 1, %s416
                  %p422 = scmp.ge.s32.totalorder %s421, %s404
                  %s423 = scalar_select %p422, 0, %s421
                  %s424 = smul.u32 %s423, 8
                  %s425 = smul.u32 %s423, 8
                  %s426 = scalar_lea.vmem %s407, %s424 [#allocation2]
                  %s427 = scalar_lea.vmem %s409, %s425
                $region74: #{tpu_custom_call.1} parent=61 // loop_footer
                  %s413 = sadd.s32 %s411, 1
                $region75: #{tpu_custom_call.1} parent=61 // loop_footer_branch
                  %410 = sbr.rel target = $region71
                $region76: #{tpu_custom_call.1} parent=61 // loop_exit
                  _
              $region62: #{tpu_custom_call.1} parent=39 // pred_fallthru
                _
              // Predicated region
              $region77: #{tpu_custom_call.1} parent=39 // pred_check
                _
              $region78: #{tpu_custom_call.1} parent=39 // pred_check_branch
                %429 = sbr.rel target = $region80
              $region79: #{tpu_custom_call.1} parent=39 // pred_region
                _
              $region80: #{tpu_custom_call.1} parent=39 // pred_fallthru
                _
            $region40: #{tpu_custom_call.1} parent=35 // pred_fallthru
              _
            // Predicated region
            $region41: #{tpu_custom_call.1} parent=35 // pred_check
              _
            $region42: #{tpu_custom_call.1} parent=35 // pred_check_branch
              %331 = sbr.rel target = $region44
            $region43: #{tpu_custom_call.1} parent=35 // pred_region
              %s333 = ssub.s32 256, 1
              %s334 = sshrl.u32 %s320, 1
              // While loop
              $region45: #{tpu_custom_call.1} parent=43 // loop_pre_header
                _
              $region46: #{tpu_custom_call.1} parent=43 // loop_header
                %s336 = sphi 0, %s338
                %p337 = scmp.ge.s32.totalorder %s336, %s334
                %s341 = sphi 0, %s350
                %s342 = sphi %s313, %s353
                %s343 = sphi %s324, %s354
              $region47: #{tpu_custom_call.1} parent=43 // loop_header_branch
                %340 = sbr.rel (%p337) target = $region51
              $region48: #{tpu_custom_call.1} parent=43 // loop_body
                %v344 = vld [vmem:[%s342] sm:%s333]
                %345 = vst [vmem:[%s343] sm:%s333] %v344
                %v346 = vld [vmem:[%s342 + $0x8] sm:%s333]
                %347 = vst [vmem:[%s343 + $0x8] sm:%s333] %v346
                %s348 = sadd.s32 1, %s341
                %p349 = scmp.ge.s32.totalorder %s348, %s334
                %s350 = scalar_select %p349, 0, %s348
                %s351 = smul.u32 %s350, 16
                %s352 = smul.u32 %s350, 16
                %s353 = scalar_lea.vmem %s313, %s351 [#allocation2]
                %s354 = scalar_lea.vmem %s324, %s352
              $region49: #{tpu_custom_call.1} parent=43 // loop_footer
                %s338 = sadd.s32 %s336, 1
              $region50: #{tpu_custom_call.1} parent=43 // loop_footer_branch
                %335 = sbr.rel target = $region46
              $region51: #{tpu_custom_call.1} parent=43 // loop_exit
                _
              %s355 = sshrl.u32 %s320, 1
              %s356 = sand.u32 %s320, 1
              %s357 = smul.u32 %s355, 2
              %s358 = smul.u32 8, %s357
              %s359 = scalar_lea.vmem %s313, %s358 [#allocation2]
              %s360 = smul.u32 8, %s357
              %s361 = scalar_lea.vmem %s324, %s360
              // While loop
              $region52: #{tpu_custom_call.1} parent=43 // loop_pre_header
                _
              $region53: #{tpu_custom_call.1} parent=43 // loop_header
                %s363 = sphi 0, %s365
                %p364 = scmp.ge.s32.totalorder %s363, %s356
                %s368 = sphi 0, %s375
                %s369 = sphi %s359, %s378
                %s370 = sphi %s361, %s379
              $region54: #{tpu_custom_call.1} parent=43 // loop_header_branch
                %367 = sbr.rel (%p364) target = $region58
              $region55: #{tpu_custom_call.1} parent=43 // loop_body
                %v371 = vld [vmem:[%s369] sm:%s333]
                %372 = vst [vmem:[%s370] sm:%s333] %v371
                %s373 = sadd.s32 1, %s368
                %p374 = scmp.ge.s32.totalorder %s373, %s356
                %s375 = scalar_select %p374, 0, %s373
                %s376 = smul.u32 %s375, 8
                %s377 = smul.u32 %s375, 8
                %s378 = scalar_lea.vmem %s359, %s376 [#allocation2]
                %s379 = scalar_lea.vmem %s361, %s377
              $region56: #{tpu_custom_call.1} parent=43 // loop_footer
                %s365 = sadd.s32 %s363, 1
              $region57: #{tpu_custom_call.1} parent=43 // loop_footer_branch
                %362 = sbr.rel target = $region53
              $region58: #{tpu_custom_call.1} parent=43 // loop_exit
                _
            $region44: #{tpu_custom_call.1} parent=35 // pred_fallthru
              _
          $region36: #{tpu_custom_call.1} parent=31 // pred_fallthru
            _
          %430 = vnop
        $region32: #{tpu_custom_call.1} parent=27 // pred_fallthru
          _
      $region28: #{tpu_custom_call.1} parent=5 // pred_fallthru
        _
      %p431 = scmp.le.s32.totalorder 2, %s8
      // Predicated region
      $region81: #{tpu_custom_call.1} parent=5 // pred_check
        %p432 = pneg %p431
      $region82: #{tpu_custom_call.1} parent=5 // pred_check_branch
        %434 = sbr.rel (%p432) target = $region84
      $region83: #{tpu_custom_call.1} parent=5 // pred_region
        %s435 = ssub.s32 %s8, 2
        // Predicated region
        $region85: #{tpu_custom_call.1} parent=83 // pred_check
          %p436 = pneg %p84
        $region86: #{tpu_custom_call.1} parent=83 // pred_check_branch
          %438 = sbr.rel (%p436) target = $region88
        $region87: #{tpu_custom_call.1} parent=83 // pred_region
          %s439 = sand.u32 %s69, 1
          %s440 = sand.u32 %s69, 1
          %s441 = smul.addr %s440, 16
          %s442 = scalar_lea.vmem [#allocation2], %s441
        $region88: #{tpu_custom_call.1} parent=83 // pred_fallthru
          _
      $region84: #{tpu_custom_call.1} parent=5 // pred_fallthru
        _
    $region6: #{tpu_custom_call.1} parent=1 // loop_footer
      %s12 = sadd.s32 1, %s8
    $region7: #{tpu_custom_call.1} parent=1 // loop_footer_branch
      %7 = sbr.rel target = $region3
    $region8: #{tpu_custom_call.1} parent=1 // loop_exit
      _

</llo_original>
